<compile_context>
chip_gen: v7x
topology: tpu7x:2x2x1
jax: 0.10.0
libtpu: 0.0.40
codegen_flags: <defaults>
</compile_context>

<pallas_src>
import functools

import jax
import jax.numpy as jnp
from jax.experimental import pallas as pl
from jax.experimental.pallas import tpu as pltpu

EPS = 1e-5


def _round_up(v, m):
    return (v + m - 1) // m * m


# ----------------------------------------------------------------------------
# Whole-image single-pass kernel: grid = (N,), one (C, HW) block per step.
# ----------------------------------------------------------------------------
def _mam_whole_kernel(inp_ref, x_ref, w1_ref, w2_ref, out_ref, *, inv_hw):
    x = x_ref[...].astype(jnp.float32)                     # (C, HW)
    C = x.shape[0]

    # Per-channel stats from the single resident tile.
    mu = jnp.sum(x, axis=1, keepdims=True) * inv_hw        # avg-pool == IN mean
    mx = jnp.max(x, axis=1, keepdims=True)
    # Centered variance (matches InstanceNorm exactly; no cancellation issue).
    var = jnp.sum((x - mu) * (x - mu), axis=1, keepdims=True) * inv_hw
    rstd = jax.lax.rsqrt(var + EPS)

    # Fused channel attention: avg & max branches as the 2 columns of one RHS.
    lane2 = jax.lax.broadcasted_iota(jnp.int32, (C, 2), 1)
    p2 = jnp.where(lane2 == 0, mu, mx)                     # (C, 2): [avg, max]
    h = jnp.maximum(
        jnp.dot(w1_ref[...], p2, preferred_element_type=jnp.float32), 0.0)
    m = jax.nn.sigmoid(
        jnp.dot(w2_ref[...], h, preferred_element_type=jnp.float32))
    mask = jnp.sum(m, axis=1, keepdims=True)               # Avg_mask + Max_mask

    # InstanceNorm folded into per-channel scale/offset:
    #   out = inp*mask + (x-mu)*rstd*(1-mask) = inp*mask + x*a + b
    a = rstd * (1.0 - mask)
    b = -mu * a
    out_ref[...] = (inp_ref[...].astype(jnp.float32) * mask + x * a + b
                    ).astype(out_ref.dtype)


# ----------------------------------------------------------------------------
# Two-phase fallback.  Phase 1: per-channel stats + mask; grid = (N, nT).
# ----------------------------------------------------------------------------
def _mam_stats_kernel(x_ref, w1_ref, w2_ref, stats_ref, s_sc, ss_sc, mx_sc, *,
                      hw_valid, hw_tile):
    t = pl.program_id(1)
    n_t = pl.num_programs(1)

    @pl.when(t == 0)
    def _():
        s_sc[...] = jnp.zeros_like(s_sc)
        ss_sc[...] = jnp.zeros_like(ss_sc)
        mx_sc[...] = jnp.full_like(mx_sc, -jnp.inf)

    x = x_ref[...].astype(jnp.float32)                     # (C, hw_tile)
    if hw_valid % hw_tile != 0:                            # static: partial last tile
        col = jax.lax.broadcasted_iota(jnp.int32, (1, hw_tile), 1) + t * hw_tile
        valid = col < hw_valid
        xs = jnp.where(valid, x, 0.0)
        xm = jnp.where(valid, x, -jnp.inf)
    else:
        xs = x
        xm = x

    s_sc[...] += jnp.sum(xs, axis=1, keepdims=True)
    ss_sc[...] += jnp.sum(xs * xs, axis=1, keepdims=True)
    mx_sc[...] = jnp.maximum(mx_sc[...], jnp.max(xm, axis=1, keepdims=True))

    @pl.when(t == n_t - 1)
    def _():
        inv_hw = jnp.float32(1.0 / hw_valid)
        mu = s_sc[...] * inv_hw
        # TODO(synk): E[x^2]-mu^2 can cancel when |mean| >> std; use a shifted
        # accumulation if non-pre-normalized inputs are expected.
        var = jnp.maximum(ss_sc[...] * inv_hw - mu * mu, 0.0)
        rstd = jax.lax.rsqrt(var + EPS)
        mx = mx_sc[...]
        C = mu.shape[0]

        lane2 = jax.lax.broadcasted_iota(jnp.int32, (C, 2), 1)
        p2 = jnp.where(lane2 == 0, mu, mx)
        h = jnp.maximum(
            jnp.dot(w1_ref[...], p2, preferred_element_type=jnp.float32), 0.0)
        m = jax.nn.sigmoid(
            jnp.dot(w2_ref[...], h, preferred_element_type=jnp.float32))
        mask = jnp.sum(m, axis=1, keepdims=True)

        a = rstd * (1.0 - mask)
        b = -mu * a
        lane4 = jax.lax.broadcasted_iota(jnp.int32, (C, 4), 1)
        stats_ref[...] = jnp.where(lane4 == 0, mask,
                                   jnp.where(lane4 == 1, a, b))


def _mam_apply_kernel(inp_ref, x_ref, stats_ref, out_ref):
    mask = stats_ref[:, 0:1]
    a = stats_ref[:, 1:2]
    b = stats_ref[:, 2:3]
    x = x_ref[...].astype(jnp.float32)
    out_ref[...] = (inp_ref[...].astype(jnp.float32) * mask + x * a + b
                    ).astype(out_ref.dtype)


# ----------------------------------------------------------------------------
# Wrapper
# ----------------------------------------------------------------------------
def mam_forward(inp, x, w1, w2, *, hw_tile=None):
    """inp, x: (N, C, H, W); w1: (C//r, C); w2: (C, C//r).

    hw_tile: if given, force the two-phase HW-tiled path with this lane tile
    (rounded up to a multiple of 128). Default: auto-select.
    """
    N, C, H, W = x.shape
    HW = H * W
    Cr = w1.shape[0]
    itemsize = jnp.dtype(x.dtype).itemsize

    inp_f = inp.reshape(N, C, HW)
    x_f = x.reshape(N, C, HW)
    w1_f = w1.astype(jnp.float32)
    w2_f = w2.astype(jnp.float32)

    # Generation-aware VMEM budget (v7x: 64 MiB physical -> ~54 MiB budget;
    # v5e/v6e: capped at 100 MiB of their 128 MiB).
    try:
        vmem_cap = int(pltpu.get_tpu_info().vmem_capacity_bytes)
    except Exception:  # pragma: no cover - conservative fallback
        vmem_cap = 64 << 20
    budget = min(int(0.85 * vmem_cap), 100 << 20)

    w_bytes = 2 * 2 * Cr * C * 4                     # both weights, double-buffered
    whole_need = (2 * 3 * C * HW * itemsize          # inp/x/out blocks, 2-buffered
                  + 3 * C * HW * 4                   # in-body f32 temporaries
                  + w_bytes + (1 << 20))

    if hw_tile is None and whole_need <= budget:
        # ----------------- whole-image single-pass path -----------------
        cost = pl.CostEstimate(
            flops=int(N * (12 * C * HW + 8 * Cr * C)),
            transcendentals=int(N * 3 * C),          # 2x sigmoid + rsqrt / channel
            bytes_accessed=int(3 * N * C * HW * itemsize),
        )
        out = pl.pallas_call(
            functools.partial(_mam_whole_kernel, inv_hw=float(1.0 / HW)),
            out_shape=jax.ShapeDtypeStruct((N, C, HW), x.dtype),
            grid_spec=pltpu.PrefetchScalarGridSpec(
                num_scalar_prefetch=0,
                grid=(N,),
                in_specs=[
                    pl.BlockSpec((None, C, HW), lambda n: (n, 0, 0)),  # inp
                    pl.BlockSpec((None, C, HW), lambda n: (n, 0, 0)),  # x
                    pl.BlockSpec((Cr, C), lambda n: (0, 0)),           # w1
                    pl.BlockSpec((C, Cr), lambda n: (0, 0)),           # w2
                ],
                out_specs=pl.BlockSpec((None, C, HW), lambda n: (n, 0, 0)),
            ),
            compiler_params=pltpu.CompilerParams(
                dimension_semantics=("parallel",),
                vmem_limit_bytes=int(min(max(whole_need, 32 << 20), budget)),
            ),
            cost_estimate=cost,
        )(inp_f, x_f, w1_f, w2_f)
        return out.reshape(N, C, H, W)

    # --------------------- two-phase HW-tiled path ----------------------
    if hw_tile is not None:
        THW = max(_round_up(int(hw_tile), 128), 128)
    else:
        per_lane = C * (2 * 3 * itemsize + 3 * 4)    # blocks (2-buf) + f32 temps
        THW = (budget - w_bytes - (1 << 20)) // max(per_lane, 1)
        THW = max((THW // 128) * 128, 128)
    THW = int(min(THW, _round_up(HW, 128)))
    nT = (HW + THW - 1) // THW

    need1 = 2 * C * THW * itemsize + 2 * C * THW * 4 + w_bytes + (1 << 20)
    need2 = 2 * 3 * C * THW * itemsize + 2 * C * THW * 4 + (1 << 20)

    stats = pl.pallas_call(
        functools.partial(_mam_stats_kernel, hw_valid=HW, hw_tile=THW),
        out_shape=jax.ShapeDtypeStruct((N, C, 4), jnp.float32),
        grid_spec=pltpu.PrefetchScalarGridSpec(
            num_scalar_prefetch=0,
            grid=(N, nT),
            in_specs=[
                pl.BlockSpec((None, C, THW), lambda n, t: (n, 0, t)),  # x
                pl.BlockSpec((Cr, C), lambda n, t: (0, 0)),            # w1
                pl.BlockSpec((C, Cr), lambda n, t: (0, 0)),            # w2
            ],
            out_specs=pl.BlockSpec((None, C, 4), lambda n, t: (n, 0, 0)),
            scratch_shapes=[pltpu.VMEM((C, 1), jnp.float32)] * 3,
        ),
        compiler_params=pltpu.CompilerParams(
            dimension_semantics=("parallel", "arbitrary"),
            vmem_limit_bytes=int(min(max(need1, 32 << 20), budget)),
        ),
        cost_estimate=pl.CostEstimate(
            flops=int(N * (4 * C * HW + 8 * Cr * C)),
            transcendentals=int(N * 3 * C),
            bytes_accessed=int(N * C * HW * itemsize),
        ),
    )(x_f, w1_f, w2_f)

    out = pl.pallas_call(
        _mam_apply_kernel,
        out_shape=jax.ShapeDtypeStruct((N, C, HW), x.dtype),
        grid_spec=pltpu.PrefetchScalarGridSpec(
            num_scalar_prefetch=0,
            grid=(N, nT),
            in_specs=[
                pl.BlockSpec((None, C, THW), lambda n, t: (n, 0, t)),  # inp
                pl.BlockSpec((None, C, THW), lambda n, t: (n, 0, t)),  # x
                pl.BlockSpec((None, C, 4), lambda n, t: (n, 0, 0)),    # stats
            ],
            out_specs=pl.BlockSpec((None, C, THW), lambda n, t: (n, 0, t)),
        ),
        compiler_params=pltpu.CompilerParams(
            dimension_semantics=("parallel", "parallel"),
            vmem_limit_bytes=int(min(max(need2, 32 << 20), budget)),
        ),
        cost_estimate=pl.CostEstimate(
            flops=int(N * 4 * C * HW),
            transcendentals=0,
            bytes_accessed=int(3 * N * C * HW * itemsize),
        ),
    )(inp_f, x_f, stats)
    return out.reshape(N, C, H, W)


def mam_reference(inp, x, w1, w2):
    """Pure-JAX reference for correctness check."""
    avg_p = jnp.mean(x, axis=(2, 3), keepdims=True)
    max_p = jnp.max(x, axis=(2, 3), keepdims=True)

    def ca(p):  # p: (N, C, 1, 1)
        h = jnp.einsum("oc,nchw->nohw", w1, p)
        h = jnp.maximum(h, 0.0)
        m = jnp.einsum("co,nohw->nchw", w2, h)
        return jax.nn.sigmoid(m)

    mask = ca(avg_p) + ca(max_p)
    mu = jnp.mean(x, axis=(2, 3), keepdims=True)
    var = jnp.mean((x - mu) ** 2, axis=(2, 3), keepdims=True)
    x_in = (x - mu) / jnp.sqrt(var + EPS)
    return inp * mask + x_in * (1 - mask)


if __name__ == "__main__":
    key = jax.random.PRNGKey(0)
    keys = jax.random.split(key, 8)

    def run_case(N, C, H, W, r, ks):
        Cr = max(C // r, 1)
        k_inp, k_x, k_w1, k_w2 = ks
        inp = jax.random.normal(k_inp, (N, C, H, W), dtype=jnp.float32)
        x = jax.random.normal(k_x, (N, C, H, W), dtype=jnp.float32)
        w1 = 0.3 * jax.random.normal(k_w1, (Cr, C), dtype=jnp.float32)
        w2 = 0.3 * jax.random.normal(k_w2, (C, Cr), dtype=jnp.float32)
        ref = mam_reference(inp, x, w1, w2)

        # Default path (whole-image single pass for these sizes).
        out = jax.block_until_ready(mam_forward(inp, x, w1, w2))
        if not jnp.allclose(out, ref, atol=1e-4, rtol=1e-4):
            raise AssertionError(f"Pallas MAM mismatch (whole) for {(N, C, H, W)}")

        # Forced two-phase tiled path (exercises the v7x large-activation
        # fallback: multi-tile accumulation and partial-tile masking).
        out2 = jax.block_until_ready(mam_forward(inp, x, w1, w2, hw_tile=128))
        if not jnp.allclose(out2, ref, atol=1e-4, rtol=1e-4):
            raise AssertionError(f"Pallas MAM mismatch (tiled) for {(N, C, H, W)}")

    # Lane-aligned case (HW = 256, two full 128-lane tiles in the tiled path).
    run_case(2, 8, 16, 16, 4, keys[:4])
    # Unaligned case (C=12, HW=49): full-dim blocks, partial-tile masking.
    run_case(2, 12, 7, 7, 4, keys[4:])

    print("KERNEL_OK")
</pallas_src>

<mosaic_0001>
module attributes {stable_mosaic.version = 11 : i64} {
  func.func @_mam_whole_kernel(%arg0: i32, %arg1: memref<1x8x256xf32, #tpu.memory_space<vmem>>, %arg2: memref<1x8x256xf32, #tpu.memory_space<vmem>>, %arg3: memref<2x8xf32, #tpu.memory_space<vmem>>, %arg4: memref<8x2xf32, #tpu.memory_space<vmem>>, %arg5: memref<1x8x256xf32, #tpu.memory_space<vmem>>) attributes {dimension_semantics = [#tpu.dimension_semantics<parallel>], iteration_bounds = array<i64: 2>, scalar_prefetch = 0 : i64, scratch_operands = 0 : i64, tpu.core_type = #tpu.core_type<tc>, window_params = [{transform_indices = @transform_0, window_bounds = array<i64: 1, 8, 256>}, {transform_indices = @transform_1, window_bounds = array<i64: 1, 8, 256>}, {pipeline_mode = #tpu.pipeline_mode<synchronous>, transform_indices = @transform_2, window_bounds = array<i64: 2, 8>}, {pipeline_mode = #tpu.pipeline_mode<synchronous>, transform_indices = @transform_3, window_bounds = array<i64: 8, 2>}, {transform_indices = @transform_4, window_bounds = array<i64: 1, 8, 256>}]} {
    %c0 = arith.constant 0 : index
    %c0_0 = arith.constant 0 : index
    %c0_1 = arith.constant 0 : index
    %0 = vector.load %arg2[%c0, %c0_0, %c0_1] : memref<1x8x256xf32, #tpu.memory_space<vmem>>, vector<1x8x256xf32>
    %1 = vector.shape_cast %0 : vector<1x8x256xf32> to vector<8x256xf32>
    %cst = arith.constant dense<0.000000e+00> : vector<8xf32>
    %2 = vector.multi_reduction <add>, %1, %cst [1] : vector<8x256xf32> to vector<8xf32>
    %3 = vector.shape_cast %2 : vector<8xf32> to vector<8x1xf32>
    %cst_2 = arith.constant 3.906250e-03 : f32
    %4 = vector.broadcast %cst_2 : f32 to vector<8x1xf32>
    %5 = arith.mulf %3, %4 : vector<8x1xf32>
    %cst_3 = arith.constant dense<0xFF800000> : vector<8xf32>
    %6 = vector.multi_reduction <maximumf>, %1, %cst_3 [1] : vector<8x256xf32> to vector<8xf32>
    %7 = vector.shape_cast %6 : vector<8xf32> to vector<8x1xf32>
    %8 = vector.broadcast %5 : vector<8x1xf32> to vector<8x256xf32>
    %9 = arith.subf %1, %8 : vector<8x256xf32>
    %10 = vector.broadcast %5 : vector<8x1xf32> to vector<8x256xf32>
    %11 = arith.subf %1, %10 : vector<8x256xf32>
    %12 = arith.mulf %9, %11 : vector<8x256xf32>
    %cst_4 = arith.constant dense<0.000000e+00> : vector<8xf32>
    %13 = vector.multi_reduction <add>, %12, %cst_4 [1] : vector<8x256xf32> to vector<8xf32>
    %14 = vector.shape_cast %13 : vector<8xf32> to vector<8x1xf32>
    %cst_5 = arith.constant 3.906250e-03 : f32
    %15 = vector.broadcast %cst_5 : f32 to vector<8x1xf32>
    %16 = arith.mulf %14, %15 : vector<8x1xf32>
    %cst_6 = arith.constant 9.99999974E-6 : f32
    %17 = vector.broadcast %cst_6 : f32 to vector<8x1xf32>
    %18 = arith.addf %16, %17 : vector<8x1xf32>
    %19 = math.rsqrt %18 : vector<8x1xf32>
    %20 = tpu.iota {dimensions = array<i32: 1>} : vector<8x2xi32>
    %c0_i32 = arith.constant 0 : i32
    %21 = vector.broadcast %c0_i32 : i32 to vector<8x2xi32>
    %22 = arith.cmpi eq, %20, %21 : vector<8x2xi32>
    %23 = vector.shape_cast %5 : vector<8x1xf32> to vector<8x1xf32>
    %24 = vector.broadcast %23 : vector<8x1xf32> to vector<8x2xf32>
    %25 = vector.shape_cast %7 : vector<8x1xf32> to vector<8x1xf32>
    %26 = vector.broadcast %25 : vector<8x1xf32> to vector<8x2xf32>
    %27 = arith.select %22, %24, %26 : vector<8x2xi1>, vector<8x2xf32>
    %c0_7 = arith.constant 0 : index
    %c0_8 = arith.constant 0 : index
    %28 = vector.load %arg3[%c0_7, %c0_8] : memref<2x8xf32, #tpu.memory_space<vmem>>, vector<2x8xf32>
    %cst_9 = arith.constant dense<0.000000e+00> : vector<2x2xf32>
    %29 = tpu.matmul %28, %27, %cst_9 {dimension_numbers = #tpu.dot_dimension_numbers<[1], [0], [0], [1], [0, 0, 1, 1], [], []>} : vector<2x8xf32>, vector<8x2xf32>, vector<2x2xf32> -> vector<2x2xf32>
    %cst_10 = arith.constant 0.000000e+00 : f32
    %30 = vector.broadcast %cst_10 : f32 to vector<2x2xf32>
    %31 = arith.maximumf %29, %30 : vector<2x2xf32>
    %c0_11 = arith.constant 0 : index
    %c0_12 = arith.constant 0 : index
    %32 = vector.load %arg4[%c0_11, %c0_12] : memref<8x2xf32, #tpu.memory_space<vmem>>, vector<8x2xf32>
    %cst_13 = arith.constant dense<0.000000e+00> : vector<8x2xf32>
    %33 = tpu.matmul %32, %31, %cst_13 {dimension_numbers = #tpu.dot_dimension_numbers<[1], [0], [0], [1], [0, 0, 1, 1], [], []>} : vector<8x2xf32>, vector<2x2xf32>, vector<8x2xf32> -> vector<8x2xf32>
    %34 = arith.negf %33 : vector<8x2xf32>
    %35 = math.exp %34 : vector<8x2xf32>
    %cst_14 = arith.constant 1.000000e+00 : f32
    %36 = vector.broadcast %cst_14 : f32 to vector<8x2xf32>
    %37 = arith.addf %36, %35 : vector<8x2xf32>
    %38 = arith.divf %36, %37 : vector<8x2xf32>
    %cst_15 = arith.constant dense<0.000000e+00> : vector<8xf32>
    %39 = vector.multi_reduction <add>, %38, %cst_15 [1] : vector<8x2xf32> to vector<8xf32>
    %40 = vector.shape_cast %39 : vector<8xf32> to vector<8x1xf32>
    %cst_16 = arith.constant 1.000000e+00 : f32
    %41 = vector.broadcast %cst_16 : f32 to vector<8x1xf32>
    %42 = arith.subf %41, %40 : vector<8x1xf32>
    %43 = arith.mulf %19, %42 : vector<8x1xf32>
    %cst_17 = arith.constant 0.000000e+00 : f32
    %44 = vector.broadcast %cst_17 : f32 to vector<8x1xf32>
    %45 = arith.subf %44, %5 : vector<8x1xf32>
    %46 = arith.mulf %45, %43 : vector<8x1xf32>
    %c0_18 = arith.constant 0 : index
    %c0_19 = arith.constant 0 : index
    %c0_20 = arith.constant 0 : index
    %47 = vector.load %arg1[%c0_18, %c0_19, %c0_20] : memref<1x8x256xf32, #tpu.memory_space<vmem>>, vector<1x8x256xf32>
    %48 = vector.shape_cast %47 : vector<1x8x256xf32> to vector<8x256xf32>
    %49 = vector.broadcast %40 : vector<8x1xf32> to vector<8x256xf32>
    %50 = arith.mulf %48, %49 : vector<8x256xf32>
    %51 = vector.broadcast %43 : vector<8x1xf32> to vector<8x256xf32>
    %52 = arith.mulf %1, %51 : vector<8x256xf32>
    %53 = arith.addf %50, %52 : vector<8x256xf32>
    %54 = vector.broadcast %46 : vector<8x1xf32> to vector<8x256xf32>
    %55 = arith.addf %53, %54 : vector<8x256xf32>
    %c0_21 = arith.constant 0 : index
    %c0_22 = arith.constant 0 : index
    %c0_23 = arith.constant 0 : index
    %56 = vector.load %arg5[%c0_21, %c0_22, %c0_23] : memref<1x8x256xf32, #tpu.memory_space<vmem>>, vector<1x8x256xf32>
    %57 = vector.shape_cast %56 : vector<1x8x256xf32> to vector<8x256xf32>
    %58 = vector.shape_cast %55 : vector<8x256xf32> to vector<1x8x256xf32>
    tpu.vector_store %arg5[%c0_21, %c0_22, %c0_23], %58 {strides = array<i32>} : memref<1x8x256xf32, #tpu.memory_space<vmem>>, vector<1x8x256xf32>,
    return
  }
  func.func @transform_0(%arg0: i32) -> (i32, i32, i32) {
    %c0_i32 = arith.constant 0 : i32
    %c0_i32_0 = arith.constant 0 : i32
    %c0_i32_1 = arith.constant 0 : i32
    return %arg0, %c0_i32, %c0_i32_0 : i32, i32, i32
  }
  func.func @transform_1(%arg0: i32) -> (i32, i32, i32) {
    %c0_i32 = arith.constant 0 : i32
    %c0_i32_0 = arith.constant 0 : i32
    %c0_i32_1 = arith.constant 0 : i32
    return %arg0, %c0_i32, %c0_i32_0 : i32, i32, i32
  }
  func.func @transform_2(%arg0: i32) -> (i32, i32) {
    %c0_i32 = arith.constant 0 : i32
    %c0_i32_0 = arith.constant 0 : i32
    %c0_i32_1 = arith.constant 0 : i32
    return %c0_i32, %c0_i32_0 : i32, i32
  }
  func.func @transform_3(%arg0: i32) -> (i32, i32) {
    %c0_i32 = arith.constant 0 : i32
    %c0_i32_0 = arith.constant 0 : i32
    %c0_i32_1 = arith.constant 0 : i32
    return %c0_i32, %c0_i32_0 : i32, i32
  }
  func.func @transform_4(%arg0: i32) -> (i32, i32, i32) {
    %c0_i32 = arith.constant 0 : i32
    %c0_i32_0 = arith.constant 0 : i32
    %c0_i32_1 = arith.constant 0 : i32
    return %arg0, %c0_i32, %c0_i32_0 : i32, i32, i32
  }
}

</mosaic_0001>

<llo_original>
// kernel: tpu_custom_call.1
$region0: #{tpu_custom_call.1}
  #allocation0 [shape = 'u32[]', space=smem, size = 0x4, offset = 0x4, fixed_abs, tag = 'smem constant byte address 0x4 - core index']
  #allocation1 [shape = 'u32[144,128]{1,0:T(1,128)}', space=vmem, size = 0x12000, scoped, tag = 'internal scratch']
  %s0 = inlined_call_operand.hbm [shape: f32[2,8,256], index: 0, kind: input, shape index: {}]
  %s1 = inlined_call_operand.hbm [shape: f32[2,8,256], index: 1, kind: input, shape index: {}]
  %s2 = inlined_call_operand.vmem [shape: f32[2,8], index: 2, kind: input, shape index: {}]
  %s3 = inlined_call_operand.vmem [shape: f32[8,2], index: 3, kind: input, shape index: {}]
  %s4 = inlined_call_operand.hbm [shape: f32[2,8,256], index: 4, kind: output, shape index: {}]
  %s5 = sld [smem:[#allocation0]]
  $region57: #{tpu_custom_call.1} parent=0
    _
  %s7 = ssub.s32 1, %s5
  %s8 = scalar_select 0, %s7, %s5
  $region1: #{tpu_custom_call.1} parent=0
    #allocation2 [shape = 'u8[16384]{0}', space=vmem, size = 0x4000, scoped, tag = 'input window, operand 0']
    #allocation3 [shape = 's32[2]{0}', space=sflag, size = 0x8, scoped, tag = 'scoped memory for tpu_custom_call.1']
    #allocation4 [shape = 's32[2]{0}', space=sflag, size = 0x8, scoped, tag = 'scoped memory for tpu_custom_call.1']
    #allocation5 [shape = 'u8[16384]{0}', space=vmem, size = 0x4000, scoped, tag = 'input window, operand 1']
    #allocation6 [shape = 's32[2]{0}', space=sflag, size = 0x8, scoped, tag = 'scoped memory for tpu_custom_call.1']
    #allocation7 [shape = 'u8[16384]{0}', space=vmem, size = 0x4000, scoped, tag = 'output window, operand 0']
    %9 = vsyncpa [#allocation3], 0
    %s10 = scalar_lea.sflag [#allocation3], 1
    %11 = vsyncpa %s10, 0
    %12 = vsyncpa [#allocation6], 0
    %s13 = scalar_lea.sflag [#allocation6], 1
    %14 = vsyncpa %s13, 0
    %15 = vsyncpa [#allocation4], 0
    %s16 = scalar_lea.sflag [#allocation4], 1
    %17 = vsyncpa %s16, 0
    loop: start=0, step=1, limit=4
    $region2: #{tpu_custom_call.1} parent=1 // loop_pre_header
      _
    $region3: #{tpu_custom_call.1} parent=1 // loop_header
      %s19 = sphi 0, %s23
      %p20 = scmp.ge.s32.totalorder %s19, 4
      %s29 = sphi 0, %s31
      %s32 = sphi 0, %s29
      %s33 = sphi 0, %s32
      %s49 = sphi 0, %s33
      %s55 = sphi 0, %s57
      %s58 = sphi 0, %s55
      %s59 = sphi 0, %s58
      %s75 = sphi 0, %s59
      %s79 = sphi 0, %s79
      %s81 = sphi 0, %s79
      %s82 = sphi 0, %s81
      %s96 = sphi 0, %s82
      %s100 = sphi 0, %s100
      %s102 = sphi 0, %s100
      %s103 = sphi 0, %s102
      %s117 = sphi 0, %s103
      %s123 = sphi 0, %s125
      %s126 = sphi 0, %s123
      %s127 = sphi 0, %s126
      %s143 = sphi 0, %s127
    $region4: #{tpu_custom_call.1} parent=1 // loop_header_branch
      %22 = sbr.rel (%p20) target = $region8
    $region5: #{tpu_custom_call.1} parent=1 // loop_body
      %s24 = ssub.s32 %s19, 1
      %s25 = ssub.s32 %s19, 2
      %s26 = sadd.s32 %s19, 1
      %s27 = ssub.s32 %s19, %s26
      %p28 = scmp.eq.s32.totalorder %s27, 0
      %s30 = sadd.s32 %s29, 1
      %s31 = scalar_select %p28, %s29, %s30
      %p34 = pneg %p28
      %p35 = scmp.eq.s32.totalorder %s19, 1
      %p36 = por %p34, %p35
      %p37 = scmp.ne.s32.totalorder %s29, %s32
      %p38 = scmp.eq.s32.totalorder %s19, 0
      %p39 = por %p37, %p38
      %p40 = scmp.ne.s32.totalorder %s29, %s32
      %p41 = scmp.eq.s32.totalorder %s24, 1
      %p42 = por %p40, %p41
      %p43 = scmp.ne.s32.totalorder %s32, %s33
      %p44 = scmp.eq.s32.totalorder %s24, 0
      %p45 = por %p43, %p44
      %p46 = scmp.ne.s32.totalorder %s32, %s33
      %p47 = scmp.eq.s32.totalorder %s25, 1
      %p48 = por %p46, %p47
      %p50 = scmp.ne.s32.totalorder %s33, %s49
      %p51 = scmp.eq.s32.totalorder %s25, 0
      %p52 = por %p50, %p51
      %s53 = ssub.s32 %s19, %s26
      %p54 = scmp.eq.s32.totalorder %s53, 0
      %s56 = sadd.s32 %s55, 1
      %s57 = scalar_select %p54, %s55, %s56
      %p60 = pneg %p54
      %p61 = scmp.eq.s32.totalorder %s19, 1
      %p62 = por %p60, %p61
      %p63 = scmp.ne.s32.totalorder %s55, %s58
      %p64 = scmp.eq.s32.totalorder %s19, 0
      %p65 = por %p63, %p64
      %p66 = scmp.ne.s32.totalorder %s55, %s58
      %p67 = scmp.eq.s32.totalorder %s24, 1
      %p68 = por %p66, %p67
      %p69 = scmp.ne.s32.totalorder %s58, %s59
      %p70 = scmp.eq.s32.totalorder %s24, 0
      %p71 = por %p69, %p70
      %p72 = scmp.ne.s32.totalorder %s58, %s59
      %p73 = scmp.eq.s32.totalorder %s25, 1
      %p74 = por %p72, %p73
      %p76 = scmp.ne.s32.totalorder %s59, %s75
      %p77 = scmp.eq.s32.totalorder %s25, 0
      %p78 = por %p76, %p77
      %s80 = sadd.s32 %s79, 1
      %p83 = scmp.eq.s32.totalorder %s19, 1
      %p84 = scmp.ne.s32.totalorder %s79, %s81
      %p85 = scmp.eq.s32.totalorder %s19, 0
      %p86 = por %p84, %p85
      %p87 = scmp.ne.s32.totalorder %s79, %s81
      %p88 = scmp.eq.s32.totalorder %s24, 1
      %p89 = por %p87, %p88
      %p90 = scmp.ne.s32.totalorder %s81, %s82
      %p91 = scmp.eq.s32.totalorder %s24, 0
      %p92 = por %p90, %p91
      %p93 = scmp.ne.s32.totalorder %s81, %s82
      %p94 = scmp.eq.s32.totalorder %s25, 1
      %p95 = por %p93, %p94
      %p97 = scmp.ne.s32.totalorder %s82, %s96
      %p98 = scmp.eq.s32.totalorder %s25, 0
      %p99 = por %p97, %p98
      %s101 = sadd.s32 %s100, 1
      %p104 = scmp.eq.s32.totalorder %s19, 1
      %p105 = scmp.ne.s32.totalorder %s100, %s102
      %p106 = scmp.eq.s32.totalorder %s19, 0
      %p107 = por %p105, %p106
      %p108 = scmp.ne.s32.totalorder %s100, %s102
      %p109 = scmp.eq.s32.totalorder %s24, 1
      %p110 = por %p108, %p109
      %p111 = scmp.ne.s32.totalorder %s102, %s103
      %p112 = scmp.eq.s32.totalorder %s24, 0
      %p113 = por %p111, %p112
      %p114 = scmp.ne.s32.totalorder %s102, %s103
      %p115 = scmp.eq.s32.totalorder %s25, 1
      %p116 = por %p114, %p115
      %p118 = scmp.ne.s32.totalorder %s103, %s117
      %p119 = scmp.eq.s32.totalorder %s25, 0
      %p120 = por %p118, %p119
      %s121 = ssub.s32 %s19, %s26
      %p122 = scmp.eq.s32.totalorder %s121, 0
      %s124 = sadd.s32 %s123, 1
      %s125 = scalar_select %p122, %s123, %s124
      %p128 = pneg %p122
      %p129 = scmp.eq.s32.totalorder %s19, 1
      %p130 = por %p128, %p129
      %p131 = scmp.ne.s32.totalorder %s123, %s126
      %p132 = scmp.eq.s32.totalorder %s19, 0
      %p133 = por %p131, %p132
      %p134 = scmp.ne.s32.totalorder %s123, %s126
      %p135 = scmp.eq.s32.totalorder %s24, 1
      %p136 = por %p134, %p135
      %p137 = scmp.ne.s32.totalorder %s126, %s127
      %p138 = scmp.eq.s32.totalorder %s24, 0
      %p139 = por %p137, %p138
      %p140 = scmp.ne.s32.totalorder %s126, %s127
      %p141 = scmp.eq.s32.totalorder %s25, 1
      %p142 = por %p140, %p141
      %p144 = scmp.ne.s32.totalorder %s127, %s143
      %p145 = scmp.eq.s32.totalorder %s25, 0
      %p146 = por %p144, %p145
      %p147 = scmp.le.s32.totalorder 1, %s19
      %p148 = scmp.lt.s32.totalorder %s19, 3
      %p149 = pnand %p147, %p148
      %p150 = pneg %p149
      // Predicated region
      $region9: #{tpu_custom_call.1} parent=5 // pred_check
        _
      $region10: #{tpu_custom_call.1} parent=5 // pred_check_branch
        %152 = sbr.rel (%p149) target = $region12
      $region11: #{tpu_custom_call.1} parent=5 // pred_region
        %s153 = ssub.s32 %s19, 1
        // Predicated region
        $region13: #{tpu_custom_call.1} parent=11 // pred_check
          %p154 = pneg %p92
        $region14: #{tpu_custom_call.1} parent=11 // pred_check_branch
          %156 = sbr.rel (%p154) target = $region16
        $region15: #{tpu_custom_call.1} parent=11 // pred_region
          _
        $region16: #{tpu_custom_call.1} parent=11 // pred_fallthru
          _
        // Predicated region
        $region17: #{tpu_custom_call.1} parent=11 // pred_check
          %p157 = pneg %p113
        $region18: #{tpu_custom_call.1} parent=11 // pred_check_branch
          %159 = sbr.rel (%p157) target = $region20
        $region19: #{tpu_custom_call.1} parent=11 // pred_region
          _
        $region20: #{tpu_custom_call.1} parent=11 // pred_fallthru
          _
      $region12: #{tpu_custom_call.1} parent=5 // pred_fallthru
        _
      %p160 = scmp.lt.s32.totalorder %s19, 2
      // Predicated region
      $region21: #{tpu_custom_call.1} parent=5 // pred_check
        %p161 = pneg %p160
      $region22: #{tpu_custom_call.1} parent=5 // pred_check_branch
        %163 = sbr.rel (%p161) target = $region24
      $region23: #{tpu_custom_call.1} parent=5 // pred_region
        // Predicated region
        $region25: #{tpu_custom_call.1} parent=23 // pred_check
          %p164 = pneg %p39
        $region26: #{tpu_custom_call.1} parent=23 // pred_check_branch
          %166 = sbr.rel (%p164) target = $region28
        $region27: #{tpu_custom_call.1} parent=23 // pred_region
          %s167 = sand.u32 %s29, 1
          %s168 = scalar_lea.sflag [#allocation3], %s167
          %s169 = sand.u32 %s29, 1
          %s170 = smul.addr %s169, 16
          %s171 = scalar_lea.vmem [#allocation2], %s170
          %s173 = ssub.s32 256, 256
          %174 = vsyncadd %s168, %s173
          %s175 = smul.addr %s19, 2
          %s176 = smul.addr %s175, 128
          %s177 = scalar_lea.hbm %s0, %s176
          %s179 = sshll.u32 %s171, 4
          %s180 = int_to_ptr.vmem [resolvable:$true] %s179
          %182 = dma.hbm_to_vmem [thread:$0]  %s177, 256, %s180, %s168
        $region28: #{tpu_custom_call.1} parent=23 // pred_fallthru
          _
        // Predicated region
        $region29: #{tpu_custom_call.1} parent=23 // pred_check
          %p183 = pneg %p65
        $region30: #{tpu_custom_call.1} parent=23 // pred_check_branch
          %185 = sbr.rel (%p183) target = $region32
        $region31: #{tpu_custom_call.1} parent=23 // pred_region
          %s186 = sand.u32 %s55, 1
          %s187 = scalar_lea.sflag [#allocation6], %s186
          %s188 = sand.u32 %s55, 1
          %s189 = smul.addr %s188, 16
          %s190 = scalar_lea.vmem [#allocation5], %s189
          %s192 = ssub.s32 256, 256
          %193 = vsyncadd %s187, %s192
          %s194 = smul.addr %s19, 2
          %s195 = smul.addr %s194, 128
          %s196 = scalar_lea.hbm %s1, %s195
          %s198 = sshll.u32 %s190, 4
          %s199 = int_to_ptr.vmem [resolvable:$true] %s198
          %201 = dma.hbm_to_vmem [thread:$0]  %s196, 256, %s199, %s187
        $region32: #{tpu_custom_call.1} parent=23 // pred_fallthru
          _
      $region24: #{tpu_custom_call.1} parent=5 // pred_fallthru
        _
      %p202 = scmp.le.s32.totalorder 1, %s19
      %p203 = scmp.lt.s32.totalorder %s19, 3
      %p204 = pnand %p202, %p203
      %p205 = pneg %p204
      // Predicated region
      $region33: #{tpu_custom_call.1} parent=5 // pred_check
        _
      $region34: #{tpu_custom_call.1} parent=5 // pred_check_branch
        %207 = sbr.rel (%p204) target = $region36
      $region35: #{tpu_custom_call.1} parent=5 // pred_region
        %s208 = ssub.s32 %s19, 1
        %s209 = sand.u32 %s32, 1
        %s210 = scalar_lea.sflag [#allocation3], %s209
        %s211 = sand.u32 %s32, 1
        %s212 = smul.addr %s211, 16
        %s213 = scalar_lea.vmem [#allocation2], %s212
        // Predicated region
        $region37: #{tpu_custom_call.1} parent=35 // pred_check
          %p214 = pneg %p45
        $region38: #{tpu_custom_call.1} parent=35 // pred_check_branch
          %216 = sbr.rel (%p214) target = $region40
        $region39: #{tpu_custom_call.1} parent=35 // pred_region
          %217 = dma.done %s210, 256
        $region40: #{tpu_custom_call.1} parent=35 // pred_fallthru
          _
        %s218 = sand.u32 %s58, 1
        %s219 = scalar_lea.sflag [#allocation6], %s218
        %s220 = sand.u32 %s58, 1
        %s221 = smul.addr %s220, 16
        %s222 = scalar_lea.vmem [#allocation5], %s221
        // Predicated region
        $region41: #{tpu_custom_call.1} parent=35 // pred_check
          %p223 = pneg %p71
        $region42: #{tpu_custom_call.1} parent=35 // pred_check_branch
          %225 = sbr.rel (%p223) target = $region44
        $region43: #{tpu_custom_call.1} parent=35 // pred_region
          %226 = dma.done %s219, 256
        $region44: #{tpu_custom_call.1} parent=35 // pred_fallthru
          _
        %s227 = sand.u32 %s32, 1
        %s228 = scalar_lea.sflag [#allocation3], %s227
        %s229 = sand.u32 %s32, 1
        %s230 = smul.addr %s229, 16
        %s231 = scalar_lea.vmem [#allocation2], %s230
        %p232 = pneg %p45
        %p233 = pneg %p42
        %s234 = sand.u32 %s58, 1
        %s235 = scalar_lea.sflag [#allocation6], %s234
        %s236 = sand.u32 %s58, 1
        %s237 = smul.addr %s236, 16
        %s238 = scalar_lea.vmem [#allocation5], %s237
        %p239 = pneg %p71
        %p240 = pneg %p68
        %p241 = pneg %p92
        %p242 = pneg %p89
        %p243 = pneg %p113
        %p244 = pneg %p110
        %p245 = pneg %p139
        %p246 = pneg %p136
        %s247 = sand.u32 %s126, 1
        %s248 = scalar_lea.sflag [#allocation4], %s247
        %s249 = sand.u32 %s126, 1
        %s250 = smul.addr %s249, 16
        %s251 = scalar_lea.vmem [#allocation7], %s250
        %v252 = vld [vmem:[%s222] sm:$0xff]
        %v253 = vld [vmem:[%s222 + $0x8] sm:$0xff]
        %v254 = vadd.f32 %v252, %v253
        %255 = vadd.xlane.f32.xlu0 %v254
        %v256 = vpop.xlane.xlu0 %255
        %v257 = vmul.f32 %v256, 0.00390625
        %v258 = vmax.f32 %v252, %v253
        %259 = vmax.xlane.f32.xlu0 %v258
        %v260 = vpop.xlane.xlu0 %259
        %v261 = vsub.f32 %v252, %v257
        %v262 = vsub.f32 %v253, %v257
        %v263 = vmul.f32 %v261, %v261
        %v264 = vmul.f32 %v262, %v262
        %v265 = vadd.f32 %v263, %v264
        %266 = vadd.xlane.f32.xlu0 %v265
        %v267 = vpop.xlane.xlu0 %266
        %v268 = vmul.f32 %v267, 0.00390625
        %v269 = vadd.f32 %v268, 1e-05
        %v270 = vrsqrt.pop %v269
        %v271 = vlaneseq
        %v272 = vand.u32 %v271, 127
        %vm273 = vcmp.eq.s32.totalorder %v272, 0
        %v274 = vsel %vm273, %v257, %v260
        %v275 = vld [vmem:[%s2] sm:$0x3]
        %vm276 = vcmask 64512
        %v278 = vsel %vm276, %v275, 0
        %280 = vmatprep.subr.mxu0 0.0
        %281 = vmatpush1.msra.mxu0 %v274
        %282 = vmatprep.subr.mxu0 0.0
        %283 = vmatpush1.msra.mxu0 0.0
        %284 = vmatprep.subr.mxu0 0.0
        %285 = vmatpush1.msra.mxu0 0.0
        %286 = vmatprep.subr.mxu0 0.0
        %287 = vmatpush1.msra.mxu0 0.0
        %288 = vmatprep.subr.mxu0 0.0
        %289 = vmatpush1.msra.mxu0 0.0
        %290 = vmatprep.subr.mxu0 0.0
        %291 = vmatpush1.msra.mxu0 0.0
        %292 = vmatprep.subr.mxu0 0.0
        %293 = vmatpush1.msra.mxu0 0.0
        %294 = vmatprep.subr.mxu0 0.0
        %295 = vmatpush1.msra.mxu0 0.0
        %296 = vmatprep.subr.mxu0 0.0
        %297 = vmatpush1.msra.mxu0 0.0
        %298 = vmatprep.subr.mxu0 0.0
        %299 = vmatpush1.msra.mxu0 0.0
        %300 = vmatprep.subr.mxu0 0.0
        %301 = vmatpush1.msra.mxu0 0.0
        %302 = vmatprep.subr.mxu0 0.0
        %303 = vmatpush1.msra.mxu0 0.0
        %304 = vmatprep.subr.mxu0 0.0
        %305 = vmatpush1.msra.mxu0 0.0
        %306 = vmatprep.subr.mxu0 0.0
        %307 = vmatpush1.msra.mxu0 0.0
        %308 = vmatprep.subr.mxu0 0.0
        %309 = vmatpush1.msra.mxu0 0.0
        %310 = vmatprep.subr.mxu0 0.0
        %311 = vmatpush1.msra.mxu0 0.0
        %312 = vmatprep.subr.mxu0 0.0
        %313 = vmatpush1.msra.mxu0 0.0
        %314 = vmatprep.subr.mxu0 0.0
        %315 = vmatpush1.msra.mxu0 0.0
        %316 = vmatprep.subr.mxu0 0.0
        %317 = vmatpush1.msra.mxu0 0.0
        %318 = vmatprep.subr.mxu0 0.0
        %319 = vmatpush1.msra.mxu0 0.0
        %320 = vmatprep.subr.mxu0 0.0
        %321 = vmatpush1.msra.mxu0 0.0
        %322 = vmatprep.subr.mxu0 0.0
        %323 = vmatpush1.msra.mxu0 0.0
        %324 = vmatprep.subr.mxu0 0.0
        %325 = vmatpush1.msra.mxu0 0.0
        %326 = vmatprep.subr.mxu0 0.0
        %327 = vmatpush1.msra.mxu0 0.0
        %328 = vmatprep.subr.mxu0 0.0
        %329 = vmatpush1.msra.mxu0 0.0
        %330 = vmatprep.subr.mxu0 0.0
        %331 = vmatpush1.msra.mxu0 0.0
        %332 = vmatprep.subr.mxu0 0.0
        %333 = vmatpush1.msra.mxu0 0.0
        %334 = vmatprep.subr.mxu0 0.0
        %335 = vmatpush1.msra.mxu0 0.0
        %336 = vmatprep.subr.mxu0 0.0
        %337 = vmatpush1.msra.mxu0 0.0
        %338 = vmatprep.subr.mxu0 0.0
        %339 = vmatpush1.msra.mxu0 0.0
        %340 = vmatprep.subr.mxu0 0.0
        %341 = vmatpush1.msra.mxu0 0.0
        %342 = vmatprep.subr.mxu0 0.0
        %343 = vmatpush1.msra.mxu0 0.0
        %344 = vmatprep.mubr.f32.mxu0 0.0
        %345 = vmatmul.mubr.f32.gmra.mrb[0].mxu0 %v278
        %v346 = vpop.f32.mrb[0].mxu0
        %v347 = vadd.f32 0.0, %v346
        %v348 = vpop.f32.mrb[0].mxu0
        %349 = vdwg.mxu0
        %v350 = vmax.f32 %v347, 0.0
        %v351 = vld [vmem:[%s3] sm:$0xff]
        %vm352 = vcmask 15360
        %v354 = vsel %vm352, %v351, 0
        %vm356 = vcmask 1041408
        %v358 = vsel %vm356, %v350, 0
        %360 = vmatprep.subr.mxu0 0.0
        %361 = vmatpush1.msra.mxu0 %v358
        %362 = vmatprep.subr.mxu0 0.0
        %363 = vmatpush1.msra.mxu0 0.0
        %364 = vmatprep.subr.mxu0 0.0
        %365 = vmatpush1.msra.mxu0 0.0
        %366 = vmatprep.subr.mxu0 0.0
        %367 = vmatpush1.msra.mxu0 0.0
        %368 = vmatprep.subr.mxu0 0.0
        %369 = vmatpush1.msra.mxu0 0.0
        %370 = vmatprep.subr.mxu0 0.0
        %371 = vmatpush1.msra.mxu0 0.0
        %372 = vmatprep.subr.mxu0 0.0
        %373 = vmatpush1.msra.mxu0 0.0
        %374 = vmatprep.subr.mxu0 0.0
        %375 = vmatpush1.msra.mxu0 0.0
        %376 = vmatprep.subr.mxu0 0.0
        %377 = vmatpush1.msra.mxu0 0.0
        %378 = vmatprep.subr.mxu0 0.0
        %379 = vmatpush1.msra.mxu0 0.0
        %380 = vmatprep.subr.mxu0 0.0
        %381 = vmatpush1.msra.mxu0 0.0
        %382 = vmatprep.subr.mxu0 0.0
        %383 = vmatpush1.msra.mxu0 0.0
        %384 = vmatprep.subr.mxu0 0.0
        %385 = vmatpush1.msra.mxu0 0.0
        %386 = vmatprep.subr.mxu0 0.0
        %387 = vmatpush1.msra.mxu0 0.0
        %388 = vmatprep.subr.mxu0 0.0
        %389 = vmatpush1.msra.mxu0 0.0
        %390 = vmatprep.subr.mxu0 0.0
        %391 = vmatpush1.msra.mxu0 0.0
        %392 = vmatprep.subr.mxu0 0.0
        %393 = vmatpush1.msra.mxu0 0.0
        %394 = vmatprep.subr.mxu0 0.0
        %395 = vmatpush1.msra.mxu0 0.0
        %396 = vmatprep.subr.mxu0 0.0
        %397 = vmatpush1.msra.mxu0 0.0
        %398 = vmatprep.subr.mxu0 0.0
        %399 = vmatpush1.msra.mxu0 0.0
        %400 = vmatprep.subr.mxu0 0.0
        %401 = vmatpush1.msra.mxu0 0.0
        %402 = vmatprep.subr.mxu0 0.0
        %403 = vmatpush1.msra.mxu0 0.0
        %404 = vmatprep.subr.mxu0 0.0
        %405 = vmatpush1.msra.mxu0 0.0
        %406 = vmatprep.subr.mxu0 0.0
        %407 = vmatpush1.msra.mxu0 0.0
        %408 = vmatprep.subr.mxu0 0.0
        %409 = vmatpush1.msra.mxu0 0.0
        %410 = vmatprep.subr.mxu0 0.0
        %411 = vmatpush1.msra.mxu0 0.0
        %412 = vmatprep.subr.mxu0 0.0
        %413 = vmatpush1.msra.mxu0 0.0
        %414 = vmatprep.subr.mxu0 0.0
        %415 = vmatpush1.msra.mxu0 0.0
        %416 = vmatprep.subr.mxu0 0.0
        %417 = vmatpush1.msra.mxu0 0.0
        %418 = vmatprep.subr.mxu0 0.0
        %419 = vmatpush1.msra.mxu0 0.0
        %420 = vmatprep.subr.mxu0 0.0
        %421 = vmatpush1.msra.mxu0 0.0
        %422 = vmatprep.subr.mxu0 0.0
        %423 = vmatpush1.msra.mxu0 0.0
        %424 = vmatprep.mubr.f32.mxu0 0.0
        %425 = vmatmul.mubr.f32.gmra.mrb[0].mxu0 %v354
        %v426 = vpop.f32.mrb[0].mxu0
        %v427 = vadd.f32 0.0, %v426
        %v428 = vpop.f32.mrb[0].mxu0
        %429 = vdwg.mxu0
        %v430 = vxor.u32 %v427, 2147483648
        %v431 = vmul.f32 %v430, 1.442695
        %v432 = vpow.pop %v431
        %v433 = vadd.f32 %v432, 1.0
        %v434 = vrcp.pop %v433
        %v435 = vmul.f32 1.0, %v434
        %v436 = vsel %vm352, %v435, 0.0
        %437 = vadd.xlane.f32.xlu0 %v436
        %v438 = vpop.xlane.xlu0 %437
        %v439 = vsub.f32 1.0, %v438
        %v440 = vmul.f32 %v270, %v439
        %v441 = vsub.f32 0.0, %v257
        %v442 = vmul.f32 %v441, %v440
        %v443 = vld [vmem:[%s213] sm:$0xff]
        %v444 = vld [vmem:[%s213 + $0x8] sm:$0xff]
        %v445 = vmul.f32 %v443, %v438
        %v446 = vmul.f32 %v444, %v438
        %v447 = vmul.f32 %v252, %v440
        %v448 = vmul.f32 %v253, %v440
        %v449 = vadd.f32 %v445, %v447
        %v450 = vadd.f32 %v446, %v448
        %v451 = vadd.f32 %v449, %v442
        %v452 = vadd.f32 %v450, %v442
        %453 = vst [vmem:[%s251] sm:$0xff] %v451
        %454 = vst [vmem:[%s251 + $0x8] sm:$0xff] %v452
        %s455 = sand.u32 %s126, 1
        %s456 = scalar_lea.sflag [#allocation4], %s455
        %s457 = sand.u32 %s126, 1
        %s458 = smul.addr %s457, 16
        %s459 = scalar_lea.vmem [#allocation7], %s458
        // Predicated region
        $region45: #{tpu_custom_call.1} parent=35 // pred_check
          %p460 = pneg %p136
        $region46: #{tpu_custom_call.1} parent=35 // pred_check_branch
          %462 = sbr.rel (%p460) target = $region48
        $region47: #{tpu_custom_call.1} parent=35 // pred_region
          %s464 = ssub.s32 256, 256
          %465 = vsyncadd %s456, %s464
          %s466 = smul.addr %s24, 2
          %s467 = smul.addr %s466, 128
          %s468 = scalar_lea.hbm %s4, %s467
          %s470 = sshll.u32 %s459, 4
          %s471 = int_to_ptr.vmem [resolvable:$true] %s470
          %473 = dma.vmem_to_hbm [thread:$0]  %s471, 256, %s468, %s456
        $region48: #{tpu_custom_call.1} parent=35 // pred_fallthru
          _
      $region36: #{tpu_custom_call.1} parent=5 // pred_fallthru
        _
      %p474 = scmp.le.s32.totalorder 2, %s19
      // Predicated region
      $region49: #{tpu_custom_call.1} parent=5 // pred_check
        %p475 = pneg %p474
      $region50: #{tpu_custom_call.1} parent=5 // pred_check_branch
        %477 = sbr.rel (%p475) target = $region52
      $region51: #{tpu_custom_call.1} parent=5 // pred_region
        %s478 = ssub.s32 %s19, 2
        // Predicated region
        $region53: #{tpu_custom_call.1} parent=51 // pred_check
          %p479 = pneg %p142
        $region54: #{tpu_custom_call.1} parent=51 // pred_check_branch
          %481 = sbr.rel (%p479) target = $region56
        $region55: #{tpu_custom_call.1} parent=51 // pred_region
          %s482 = sand.u32 %s127, 1
          %s483 = scalar_lea.sflag [#allocation4], %s482
          %s484 = sand.u32 %s127, 1
          %s485 = smul.addr %s484, 16
          %s486 = scalar_lea.vmem [#allocation7], %s485
          %487 = dma.done %s483, 256
        $region56: #{tpu_custom_call.1} parent=51 // pred_fallthru
          _
      $region52: #{tpu_custom_call.1} parent=5 // pred_fallthru
        _
    $region6: #{tpu_custom_call.1} parent=1 // loop_footer
      %s23 = sadd.s32 1, %s19
    $region7: #{tpu_custom_call.1} parent=1 // loop_footer_branch
      %18 = sbr.rel target = $region3
    $region8: #{tpu_custom_call.1} parent=1 // loop_exit
      _
    %488 = vsyncpa [#allocation3], 1
    %s489 = scalar_lea.sflag [#allocation3], 1
    %490 = vsyncpa %s489, 1
    %491 = vsyncpa [#allocation6], 1
    %s492 = scalar_lea.sflag [#allocation6], 1
    %493 = vsyncpa %s492, 1
    %494 = vsyncpa [#allocation4], 1
    %s495 = scalar_lea.sflag [#allocation4], 1
    %496 = vsyncpa %s495, 1

</llo_original>
